<compile_context>
chip_gen: v6e
topology: v6e:2x2x1
jax: 0.10.0
libtpu: 0.0.40
codegen_flags: <defaults>
</compile_context>

<pallas_src>
import functools
import math

import jax
import jax.numpy as jnp
from jax.experimental import pallas as pl
from jax.experimental.pallas import tpu as pltpu


_LANE = 128
# ~2 MiB per block; with 3 big refs x 2 pipeline buffers that is ~12 MiB of
# scoped VMEM -- inside the most restrictive default (v5e: 16 MiB).
_TARGET_BLOCK_BYTES = 2 * 1024 * 1024


def _sublane(dtype) -> int:
    # Sublane granularity per dtype: f32 -> 8 rows, bf16 -> 16, int8/fp8 -> 32.
    return {1: 32, 2: 16, 4: 8}.get(jnp.dtype(dtype).itemsize, 8)


def _round_up(x: int, m: int) -> int:
    return ((x + m - 1) // m) * m


def _choose_row_tile(rows: int, width: int, dtype) -> int:
    """Largest sublane-aligned row tile within the VMEM budget, keeping >=2 grid steps."""
    sub = _sublane(dtype)
    itemsize = jnp.dtype(dtype).itemsize
    max_rows = max(sub, (_TARGET_BLOCK_BYTES // max(1, width * itemsize)) // sub * sub)
    if rows <= sub:
        return rows  # single tiny block == full extent (allowed by the (8,128) rule)
    half = _round_up(pl.cdiv(rows, 2), sub)  # ensures at least 2 grid steps
    return min(max_rows, half)


def _pick_flat_width(n: int) -> int:
    for w in (2048, 1024, 512, 256, 128):
        if n >= w:
            return w
    return max(n, 1)


def _residual_scaled_kernel(x_ref, r_ref, s_ref, o_ref):
    # compute in f32, cast at the store (scale is kept in f32)
    x = x_ref[...].astype(jnp.float32)
    r = r_ref[...].astype(jnp.float32)
    o_ref[...] = (x + r * s_ref[...]).astype(o_ref.dtype)


def _residual_kernel(x_ref, r_ref, o_ref, *, const):
    x = x_ref[...].astype(jnp.float32)
    r = r_ref[...].astype(jnp.float32)
    if const != 1.0:
        r = r * jnp.float32(const)
    o_ref[...] = (x + r).astype(o_ref.dtype)


def residual_forward(x, residual, residual_scale=None, scale_residual_constant=1.0,
                     *, donate_x=False):
    """Pallas implementation of Residual.forward.

    x, residual: (..., dim) arrays (same shape).
    residual_scale: optional (dim,) array.
    donate_x: if True, alias x's buffer with the output (safe; XLA copies if x
              is still live elsewhere).
    """
    orig_shape = x.shape
    dtype = x.dtype
    dim = orig_shape[-1]
    const = float(scale_residual_constant)

    if residual_scale is not None:
        # ---- per-dim scale path -------------------------------------------
        x2 = x.reshape(-1, dim)
        r2 = residual.reshape(-1, dim)
        rows = x2.shape[0]

        # Pack `g` logical rows so g*dim is a multiple of 128 (g == 1 when dim
        # already is).  Keeps stores unmasked & lane-dense without padding the
        # feature axis with zeros.
        g = math.lcm(dim, _LANE) // dim
        width = g * dim
        if width * jnp.dtype(dtype).itemsize > _TARGET_BLOCK_BYTES:
            g, width = 1, dim  # degenerate huge-dim fallback: skip packing

        rows_p = _round_up(max(rows, 1), g)
        if rows_p != rows:
            pad = ((0, rows_p - rows), (0, 0))
            x2 = jnp.pad(x2, pad)
            r2 = jnp.pad(r2, pad)
        grows = rows_p // g
        x2 = x2.reshape(grows, width)
        r2 = r2.reshape(grows, width)

        # Fold the constant into the (1, width) f32 scale vector.
        scale = jnp.tile(residual_scale.astype(jnp.float32) * jnp.float32(const), g)
        scale = scale.reshape(1, width)

        row_tile = _choose_row_tile(grows, width, dtype)
        grid = (pl.cdiv(grows, row_tile),)

        out2 = pl.pallas_call(
            _residual_scaled_kernel,
            out_shape=jax.ShapeDtypeStruct((grows, width), dtype),
            grid=grid,
            in_specs=[
                pl.BlockSpec((row_tile, width), lambda i: (i, 0)),
                pl.BlockSpec((row_tile, width), lambda i: (i, 0)),
                pl.BlockSpec((1, width), lambda i: (0, 0)),
            ],
            out_specs=pl.BlockSpec((row_tile, width), lambda i: (i, 0)),
            compiler_params=pltpu.CompilerParams(
                dimension_semantics=("parallel",)),
            input_output_aliases={0: 0} if donate_x else {},
        )(x2, r2, scale)

        out = out2.reshape(rows_p, dim)[:rows]
        return out.reshape(orig_shape)

    # ---- no per-dim scale: fully flatten into a lane-dense slab ------------
    n = x.size
    xf = x.reshape(-1)
    rf = residual.reshape(-1)
    width = _pick_flat_width(n)
    n_p = _round_up(n, width)
    if n_p != n:
        xf = jnp.pad(xf, (0, n_p - n))
        rf = jnp.pad(rf, (0, n_p - n))
    rows = n_p // width
    x2 = xf.reshape(rows, width)
    r2 = rf.reshape(rows, width)

    row_tile = _choose_row_tile(rows, width, dtype)
    grid = (pl.cdiv(rows, row_tile),)
    kernel = functools.partial(_residual_kernel, const=const)

    out2 = pl.pallas_call(
        kernel,
        out_shape=jax.ShapeDtypeStruct((rows, width), dtype),
        grid=grid,
        in_specs=[
            pl.BlockSpec((row_tile, width), lambda i: (i, 0)),
            pl.BlockSpec((row_tile, width), lambda i: (i, 0)),
        ],
        out_specs=pl.BlockSpec((row_tile, width), lambda i: (i, 0)),
        compiler_params=pltpu.CompilerParams(
            dimension_semantics=("parallel",)),
        input_output_aliases={0: 0} if donate_x else {},
    )(x2, r2)

    return out2.reshape(-1)[:n].reshape(orig_shape)


if __name__ == "__main__":
    key = jax.random.PRNGKey(0)
    k1, k2, k3, k4 = jax.random.split(key, 4)

    # --- case 1: small dim (32) with scale + constant (lane-packing path) ---
    batch, seq, dim = 2, 8, 32
    x = jax.random.normal(k1, (batch, seq, dim), dtype=jnp.float32)
    residual = jax.random.normal(k2, (batch, seq, dim), dtype=jnp.float32)
    residual_scale = jnp.ones((dim,), dtype=jnp.float32)
    scale_residual_constant = 2.0

    out = residual_forward(x, residual, residual_scale, scale_residual_constant)
    out = jax.block_until_ready(out)
    ref = x + residual * residual_scale.reshape(1, 1, dim) * scale_residual_constant
    assert jnp.allclose(out, ref, atol=1e-6), "mismatch vs reference (scaled, dim=32)"

    # --- case 2: no-scale / constant==1 path (flattened lane-dense slab) ----
    out2 = jax.block_until_ready(residual_forward(x, residual, None, 1.0))
    assert jnp.allclose(out2, x + residual, atol=1e-6), "mismatch (no-scale path)"

    # --- case 3: dim multiple of 128, bf16 activations, donated x buffer ----
    dim3 = 256
    x3 = jax.random.normal(k3, (batch, seq, dim3), dtype=jnp.float32).astype(jnp.bfloat16)
    r3 = jax.random.normal(k4, (batch, seq, dim3), dtype=jnp.float32).astype(jnp.bfloat16)
    s3 = jnp.full((dim3,), 0.5, dtype=jnp.float32)
    out3 = jax.block_until_ready(
        residual_forward(x3, r3, s3, 3.0, donate_x=True))
    ref3 = (x3.astype(jnp.float32) + r3.astype(jnp.float32) * s3 * 3.0).astype(jnp.bfloat16)
    assert jnp.allclose(out3.astype(jnp.float32), ref3.astype(jnp.float32), atol=1e-2), \
        "mismatch (bf16, dim=256, donated)"

    print("KERNEL_OK")
</pallas_src>

<mosaic_0001>
module attributes {stable_mosaic.version = 11 : i64} {
  func.func @_residual_scaled_kernel(%arg0: i32, %arg1: memref<4x128xf32, #tpu.memory_space<vmem>>, %arg2: memref<4x128xf32, #tpu.memory_space<vmem>>, %arg3: memref<1x128xf32, #tpu.memory_space<vmem>>, %arg4: memref<4x128xf32, #tpu.memory_space<vmem>>) attributes {dimension_semantics = [#tpu.dimension_semantics<parallel>], iteration_bounds = array<i64: 1>, scalar_prefetch = 0 : i64, scratch_operands = 0 : i64, tpu.core_type = #tpu.core_type<tc>, window_params = [{transform_indices = @transform_0, window_bounds = array<i64: 4, 128>}, {transform_indices = @transform_1, window_bounds = array<i64: 4, 128>}, {pipeline_mode = #tpu.pipeline_mode<synchronous>, transform_indices = @transform_2, window_bounds = array<i64: 1, 128>}, {transform_indices = @transform_3, window_bounds = array<i64: 4, 128>}]} {
    %c0 = arith.constant 0 : index
    %c0_0 = arith.constant 0 : index
    %0 = vector.load %arg1[%c0, %c0_0] : memref<4x128xf32, #tpu.memory_space<vmem>>, vector<4x128xf32>
    %c0_1 = arith.constant 0 : index
    %c0_2 = arith.constant 0 : index
    %1 = vector.load %arg2[%c0_1, %c0_2] : memref<4x128xf32, #tpu.memory_space<vmem>>, vector<4x128xf32>
    %c0_3 = arith.constant 0 : index
    %c0_4 = arith.constant 0 : index
    %2 = vector.load %arg3[%c0_3, %c0_4] : memref<1x128xf32, #tpu.memory_space<vmem>>, vector<1x128xf32>
    %3 = vector.broadcast %2 : vector<1x128xf32> to vector<4x128xf32>
    %4 = arith.mulf %1, %3 : vector<4x128xf32>
    %5 = arith.addf %0, %4 : vector<4x128xf32>
    %c0_5 = arith.constant 0 : index
    %c0_6 = arith.constant 0 : index
    %6 = vector.load %arg4[%c0_5, %c0_6] : memref<4x128xf32, #tpu.memory_space<vmem>>, vector<4x128xf32>
    tpu.vector_store %arg4[%c0_5, %c0_6], %5 {strides = array<i32>} : memref<4x128xf32, #tpu.memory_space<vmem>>, vector<4x128xf32>,
    return
  }
  func.func @transform_0(%arg0: i32) -> (i32, i32) {
    %c0_i32 = arith.constant 0 : i32
    %c0_i32_0 = arith.constant 0 : i32
    return %arg0, %c0_i32 : i32, i32
  }
  func.func @transform_1(%arg0: i32) -> (i32, i32) {
    %c0_i32 = arith.constant 0 : i32
    %c0_i32_0 = arith.constant 0 : i32
    return %arg0, %c0_i32 : i32, i32
  }
  func.func @transform_2(%arg0: i32) -> (i32, i32) {
    %c0_i32 = arith.constant 0 : i32
    %c0_i32_0 = arith.constant 0 : i32
    %c0_i32_1 = arith.constant 0 : i32
    return %c0_i32, %c0_i32_0 : i32, i32
  }
  func.func @transform_3(%arg0: i32) -> (i32, i32) {
    %c0_i32 = arith.constant 0 : i32
    %c0_i32_0 = arith.constant 0 : i32
    return %arg0, %c0_i32 : i32, i32
  }
}

</mosaic_0001>

<llo_original>
// kernel: tpu_custom_call.1
$region0: #{tpu_custom_call.1}
  #allocation0 [shape = 'u32[]', space=smem, size = 0x4, offset = 0x4, fixed_abs, tag = 'smem constant byte address 0x4 - core index']
  #allocation1 [shape = 'u32[144,128]{1,0:T(1,128)}', space=vmem, size = 0x12000, scoped, tag = 'internal scratch']
  %s0 = inlined_call_operand.hbm [shape: f32[4,128], index: 0, kind: input, shape index: {}]
  %s1 = inlined_call_operand.hbm [shape: f32[4,128], index: 1, kind: input, shape index: {}]
  %s2 = inlined_call_operand.vmem [shape: f32[1,128], index: 2, kind: input, shape index: {}]
  %s3 = inlined_call_operand.hbm [shape: f32[4,128], index: 3, kind: output, shape index: {}]
  %s4 = sld [smem:[#allocation0]]
  $region30: #{tpu_custom_call.1} parent=0
    _
  %s6 = ssub.s32 1, %s4
  %s7 = scalar_select 0, %s6, %s4
  $region1: #{tpu_custom_call.1} parent=0
    #allocation2 [shape = 'u8[2048]{0}', space=vmem, size = 0x800, scoped, tag = 'input window, operand 0, single buffered']
    #allocation3 [shape = 's32[1]{0}', space=sflag, size = 0x4, scoped, tag = 'scoped memory for tpu_custom_call.1']
    #allocation4 [shape = 's32[1]{0}', space=sflag, size = 0x4, scoped, tag = 'scoped memory for tpu_custom_call.1']
    #allocation5 [shape = 'u8[2048]{0}', space=vmem, size = 0x800, scoped, tag = 'input window, operand 1, single buffered']
    #allocation6 [shape = 's32[1]{0}', space=sflag, size = 0x4, scoped, tag = 'scoped memory for tpu_custom_call.1']
    #allocation7 [shape = 'u8[2048]{0}', space=vmem, size = 0x800, scoped, tag = 'output window, operand 0, single buffered']
    %8 = vsyncpa [#allocation3], 0
    %9 = vsyncpa [#allocation6], 0
    %10 = vsyncpa [#allocation4], 0
    // Predicated region
    $region2: #{tpu_custom_call.1} parent=1 // pred_check
      _
    $region3: #{tpu_custom_call.1} parent=1 // pred_check_branch
      %12 = sbr.rel (0) target = $region5
    $region4: #{tpu_custom_call.1} parent=1 // pred_region
      %s14 = ssub.s32 64, 64
      %15 = vsyncadd [#allocation3], %s14
      %s17 = sshll.u32 [#allocation2], 4
      %s18 = int_to_ptr.vmem [resolvable:$true] %s17
      %20 = dma.hbm_to_vmem [thread:$0]  %s0, 64, %s18, [#allocation3]
    $region5: #{tpu_custom_call.1} parent=1 // pred_fallthru
      _
    // Predicated region
    $region6: #{tpu_custom_call.1} parent=1 // pred_check
      _
    $region7: #{tpu_custom_call.1} parent=1 // pred_check_branch
      %22 = sbr.rel (0) target = $region9
    $region8: #{tpu_custom_call.1} parent=1 // pred_region
      %s24 = ssub.s32 64, 64
      %25 = vsyncadd [#allocation6], %s24
      %s27 = sshll.u32 [#allocation5], 4
      %s28 = int_to_ptr.vmem [resolvable:$true] %s27
      %30 = dma.hbm_to_vmem [thread:$0]  %s1, 64, %s28, [#allocation6]
    $region9: #{tpu_custom_call.1} parent=1 // pred_fallthru
      _
    // Predicated region
    $region10: #{tpu_custom_call.1} parent=1 // pred_check
      _
    $region11: #{tpu_custom_call.1} parent=1 // pred_check_branch
      %32 = sbr.rel (0) target = $region13
    $region12: #{tpu_custom_call.1} parent=1 // pred_region
      _
    $region13: #{tpu_custom_call.1} parent=1 // pred_fallthru
      _
    // Predicated region
    $region14: #{tpu_custom_call.1} parent=1 // pred_check
      _
    $region15: #{tpu_custom_call.1} parent=1 // pred_check_branch
      %34 = sbr.rel (0) target = $region17
    $region16: #{tpu_custom_call.1} parent=1 // pred_region
      %35 = dma.done [#allocation3], 64
    $region17: #{tpu_custom_call.1} parent=1 // pred_fallthru
      _
    // Predicated region
    $region18: #{tpu_custom_call.1} parent=1 // pred_check
      _
    $region19: #{tpu_custom_call.1} parent=1 // pred_check_branch
      %37 = sbr.rel (0) target = $region21
    $region20: #{tpu_custom_call.1} parent=1 // pred_region
      %38 = dma.done [#allocation6], 64
    $region21: #{tpu_custom_call.1} parent=1 // pred_fallthru
      _
    %v39 = vld [vmem:[#allocation2] sm:$0xf]
    %v40 = vld [vmem:[#allocation5] sm:$0xf]
    %v41 = vld [vmem:[%s2] sm:$0x1]
    %v43 = vlaneseq
    %v44 = vshrl.u32 %v43, 7
    %v45 = vsub.s32 0, %v44
    %v46 = vrot.slane %v41, %v45
    %v48 = vmul.f32 %v40, %v46
    %v49 = vadd.f32 %v39, %v48
    %50 = vst [vmem:[#allocation7] sm:$0xf] %v49
    // Predicated region
    $region22: #{tpu_custom_call.1} parent=1 // pred_check
      _
    $region23: #{tpu_custom_call.1} parent=1 // pred_check_branch
      %52 = sbr.rel (0) target = $region25
    $region24: #{tpu_custom_call.1} parent=1 // pred_region
      %s54 = ssub.s32 64, 64
      %55 = vsyncadd [#allocation4], %s54
      %s57 = sshll.u32 [#allocation7], 4
      %s58 = int_to_ptr.vmem [resolvable:$true] %s57
      %60 = dma.vmem_to_hbm [thread:$0]  %s58, 64, %s3, [#allocation4]
    $region25: #{tpu_custom_call.1} parent=1 // pred_fallthru
      _
    // Predicated region
    $region26: #{tpu_custom_call.1} parent=1 // pred_check
      _
    $region27: #{tpu_custom_call.1} parent=1 // pred_check_branch
      %62 = sbr.rel (0) target = $region29
    $region28: #{tpu_custom_call.1} parent=1 // pred_region
      %63 = dma.done [#allocation4], 64
    $region29: #{tpu_custom_call.1} parent=1 // pred_fallthru
      _
    %64 = vsyncpa [#allocation3], 1
    %65 = vsyncpa [#allocation6], 1
    %66 = vsyncpa [#allocation4], 1

</llo_original>
